<compile_context>
chip_gen: v7x
topology: tpu7x:2x2x1
jax: 0.10.0
libtpu: 0.0.40
codegen_flags: <defaults>
</compile_context>

<pallas_src>
import math

import jax
import jax.numpy as jnp
from jax.experimental import pallas as pl
from jax.experimental.pallas import tpu as pltpu


# ----------------------------- constants / helpers ------------------------- #
MAX_TM = 512          # max rows per grid step (multiple of 16 for bf16 packing)
MIN_TH = 256          # hidden is padded/streamed in multiples of 256 (MXU-256)


def _ceil_to(x, m):
    return ((x + m - 1) // m) * m


def _vmem_capacity_bytes():
    """Per-generation VMEM capacity; conservative 64 MiB (v7x) fallback."""
    try:
        return int(pltpu.get_tpu_info().vmem_capacity_bytes)
    except Exception:
        return 64 * 1024 * 1024


def _pick_tiles(n, d_model, hidden_pad, compute_itemsize, out_itemsize, budget):
    """Pick (tm, th): largest M tile and hidden chunk whose working set fits VMEM."""

    def est(tm, th):
        dbl = 2  # conservatively assume double-buffering on every operand
        x_buf = dbl * tm * d_model * compute_itemsize
        w1_buf = dbl * d_model * th * compute_itemsize
        b1_buf = dbl * th * 4
        w2_buf = dbl * th * d_model * compute_itemsize
        b2_buf = d_model * 4
        out_buf = dbl * tm * d_model * out_itemsize
        acc = tm * d_model * 4                      # f32 output accumulator
        h_tmp = tm * th * (4 + compute_itemsize)    # f32 dot result + bf16 copy
        return x_buf + w1_buf + b1_buf + w2_buf + b2_buf + out_buf + acc + h_tmp

    # hidden chunk must be a multiple of 256 that divides hidden_pad (no ragged K).
    th_cands = [t for t in range(hidden_pad, MIN_TH - 1, -MIN_TH) if hidden_pad % t == 0]

    tm = min(MAX_TM, _ceil_to(n, 16))
    while True:
        for th in th_cands:
            if est(tm, th) <= budget:
                return tm, th
        if tm <= 16:
            return 16, th_cands[-1]
        tm = max(16, _ceil_to(tm // 2, 16))


# ------------------------------ fused FFN kernel --------------------------- #
def _ffn_kernel(x_ref, w1_ref, b1_ref, w2_ref, b2_ref, o_ref, acc_ref):
    """One M-tile x one hidden-chunk:  acc += relu(x@w1_j + b1_j) @ w2_j."""
    j = pl.program_id(1)

    @pl.when(j == 0)
    def _():
        acc_ref[...] = jnp.zeros_like(acc_ref)

    # Stage 1: hidden-chunk activation in f32 (bias + ReLU fused, never hits HBM).
    h = jnp.dot(x_ref[...], w1_ref[...], preferred_element_type=jnp.float32)
    h = jnp.maximum(h + b1_ref[...], 0.0)
    # TODO(synk): training-mode dropout (pltpu.prng_seed / prng_random_bits) not
    # implemented; nn.Dropout is the identity in eval mode.

    # Stage 2: contract the chunk with w2 straight into the f32 accumulator.
    acc_ref[...] += jnp.dot(h.astype(w2_ref.dtype), w2_ref[...],
                            preferred_element_type=jnp.float32)

    @pl.when(j == pl.num_programs(1) - 1)
    def _():
        o_ref[...] = (acc_ref[...] + b2_ref[...]).astype(o_ref.dtype)


# --------------------------------- forward --------------------------------- #
def feed_forward_forward(x, prepped):
    """x: (..., d_model) -> (..., d_model).  `prepped` from prepare_params()."""
    d_model = x.shape[-1]
    n = math.prod(x.shape[:-1]) if x.ndim > 1 else 1

    w1, b1, w2, b2 = prepped["w1"], prepped["b1"], prepped["w2"], prepped["b2"]
    hidden_pad = w1.shape[1]
    assert w1.shape[0] == d_model and w2.shape[1] == d_model

    compute_dtype = w1.dtype
    out_dtype = x.dtype

    vmem_cap = _vmem_capacity_bytes()
    budget = max(int(vmem_cap * 0.85), 32 * 1024 * 1024)   # ~54 MiB v7x, ~109 MiB v5e/v6e

    tm, th = _pick_tiles(n, d_model, hidden_pad,
                         jnp.dtype(compute_dtype).itemsize,
                         jnp.dtype(out_dtype).itemsize, budget)
    grid = (pl.cdiv(n, tm), hidden_pad // th)

    # bf16 datapath; cast at the boundary (no jnp.pad, no output slice needed).
    xb = x.reshape(n, d_model).astype(compute_dtype)

    y = pl.pallas_call(
        _ffn_kernel,
        out_shape=jax.ShapeDtypeStruct((n, d_model), out_dtype),
        grid_spec=pltpu.PrefetchScalarGridSpec(
            num_scalar_prefetch=0,
            grid=grid,
            in_specs=[
                pl.BlockSpec((tm, d_model), lambda i, j: (i, 0)),   # x tile (resident over j)
                pl.BlockSpec((d_model, th), lambda i, j: (0, j)),   # w1 chunk
                pl.BlockSpec((1, th),       lambda i, j: (0, j)),   # b1 chunk (f32)
                pl.BlockSpec((th, d_model), lambda i, j: (j, 0)),   # w2 chunk
                pl.BlockSpec((1, d_model),  lambda i, j: (0, 0)),   # b2 (f32)
            ],
            out_specs=pl.BlockSpec((tm, d_model), lambda i, j: (i, 0)),
            scratch_shapes=[pltpu.VMEM((tm, d_model), jnp.float32)],
        ),
        compiler_params=pltpu.CompilerParams(
            dimension_semantics=("parallel", "arbitrary"),
            vmem_limit_bytes=int(budget),
        ),
    )(xb, w1, b1, w2, b2)

    return y.reshape(x.shape)


# --------------------------------- params ---------------------------------- #
def init_params(key, d_model, hidden):
    """PyTorch nn.Linear-style init; weights stored in torch (out, in) layout."""
    ks = jax.random.split(key, 4)
    b1_bound = 1.0 / (d_model ** 0.5)
    b2_bound = 1.0 / (hidden ** 0.5)
    u = lambda k, shape, bnd: jax.random.uniform(k, shape, jnp.float32, -bnd, bnd)
    return dict(
        w1=u(ks[0], (hidden, d_model), b1_bound), b1=u(ks[1], (hidden,), b1_bound),
        w2=u(ks[2], (d_model, hidden), b2_bound), b2=u(ks[3], (d_model,), b2_bound),
    )


def prepare_params(params, compute_dtype=jnp.bfloat16):
    """One-time packing: transpose to (d_in, d_out), cast to bf16, zero-pad the
    hidden dim to a multiple of 256 (full-width MXU passes on v6e/v7x).  Biases
    stay f32 (tiny) so the bias+ReLU epilogue is exact.  Padded hidden columns
    of w1 / rows of w2 are zero -> relu(0+0)=0 -> contribute nothing."""
    w1, b1, w2, b2 = params["w1"], params["b1"], params["w2"], params["b2"]
    hidden, d_model = w1.shape
    hidden_pad = _ceil_to(hidden, MIN_TH)

    w1p = jnp.zeros((d_model, hidden_pad), compute_dtype)
    w1p = w1p.at[:, :hidden].set(w1.T.astype(compute_dtype))
    b1p = jnp.zeros((1, hidden_pad), jnp.float32).at[0, :hidden].set(b1.astype(jnp.float32))

    w2p = jnp.zeros((hidden_pad, d_model), compute_dtype)
    w2p = w2p.at[:hidden, :].set(w2.T.astype(compute_dtype))
    b2p = b2.astype(jnp.float32).reshape(1, d_model)

    return dict(w1=w1p, b1=b1p, w2=w2p, b2=b2p)


# ------------------------- pure-JAX references ------------------------------ #
def reference_forward(x, params):
    h = jnp.maximum(x @ params["w1"].T + params["b1"], 0.0)
    return h @ params["w2"].T + params["b2"]


def reference_forward_bf16(x, params):
    """Matches the kernel's bf16 datapath (bf16 operands, f32 accumulate)."""
    f = lambda a: a.astype(jnp.bfloat16).astype(jnp.float32)
    h = jnp.maximum(f(x) @ f(params["w1"].T) + params["b1"], 0.0)
    return f(h) @ f(params["w2"].T) + params["b2"]


if __name__ == "__main__":
    SEQ, BATCH, D_MODEL, HIDDEN = 8, 2, 32, 64
    root = jax.random.PRNGKey(0)
    kx, kp = jax.random.split(root)
    x = jax.random.normal(kx, (SEQ, BATCH, D_MODEL), jnp.float32)

    params = init_params(kp, D_MODEL, HIDDEN)
    prepped = prepare_params(params)          # done once, outside the forward pass

    out = feed_forward_forward(x, prepped)
    out = jax.block_until_ready(out)

    assert out.shape == (SEQ, BATCH, D_MODEL)
    # Tight check vs a reference that uses the same bf16 datapath ...
    ref_bf16 = reference_forward_bf16(x, params)
    assert jnp.allclose(out, ref_bf16, atol=2e-3, rtol=2e-3)
    # ... and a looser check vs the exact f32 PyTorch-equivalent reference.
    ref_f32 = reference_forward(x, params)
    assert jnp.allclose(out, ref_f32, atol=6e-2, rtol=6e-2)
    print("KERNEL_OK")
</pallas_src>

<mosaic_0001>
module attributes {stable_mosaic.version = 11 : i64} {
  func.func @_ffn_kernel(%arg0: i32, %arg1: i32, %arg2: memref<16x32xbf16, #tpu.memory_space<vmem>>, %arg3: memref<32x256xbf16, #tpu.memory_space<vmem>>, %arg4: memref<1x256xf32, #tpu.memory_space<vmem>>, %arg5: memref<256x32xbf16, #tpu.memory_space<vmem>>, %arg6: memref<1x32xf32, #tpu.memory_space<vmem>>, %arg7: memref<16x32xf32, #tpu.memory_space<vmem>>, %arg8: memref<16x32xf32, #tpu.memory_space<vmem>>) attributes {dimension_semantics = [#tpu.dimension_semantics<parallel>, #tpu.dimension_semantics<arbitrary>], iteration_bounds = array<i64: 1, 1>, scalar_prefetch = 0 : i64, scratch_operands = 1 : i64, tpu.core_type = #tpu.core_type<tc>, window_params = [{transform_indices = @transform_0, window_bounds = array<i64: 16, 32>}, {transform_indices = @transform_1, window_bounds = array<i64: 32, 256>}, {transform_indices = @transform_2, window_bounds = array<i64: 1, 256>}, {transform_indices = @transform_3, window_bounds = array<i64: 256, 32>}, {pipeline_mode = #tpu.pipeline_mode<synchronous>, transform_indices = @transform_4, window_bounds = array<i64: 1, 32>}, {transform_indices = @transform_5, window_bounds = array<i64: 16, 32>}]} {
    %c0_i32 = arith.constant 0 : i32
    %0 = arith.cmpi eq, %arg1, %c0_i32 : i32
    %1 = arith.extui %0 : i1 to i32
    %c0_i32_0 = arith.constant 0 : i32
    %2 = arith.cmpi ne, %1, %c0_i32_0 : i32
    scf.if %2 {
      %cst_16 = arith.constant 0.000000e+00 : f32
      %20 = vector.broadcast %cst_16 : f32 to vector<16x32xf32>
      %c0_17 = arith.constant 0 : index
      %c0_18 = arith.constant 0 : index
      %21 = vector.load %arg8[%c0_17, %c0_18] : memref<16x32xf32, #tpu.memory_space<vmem>>, vector<16x32xf32>
      tpu.vector_store %arg8[%c0_17, %c0_18], %20 {strides = array<i32>} : memref<16x32xf32, #tpu.memory_space<vmem>>, vector<16x32xf32>,
    } else {
    }
    %c0 = arith.constant 0 : index
    %c0_1 = arith.constant 0 : index
    %3 = vector.load %arg2[%c0, %c0_1] : memref<16x32xbf16, #tpu.memory_space<vmem>>, vector<16x32xbf16>
    %c0_2 = arith.constant 0 : index
    %c0_3 = arith.constant 0 : index
    %4 = vector.load %arg3[%c0_2, %c0_3] : memref<32x256xbf16, #tpu.memory_space<vmem>>, vector<32x256xbf16>
    %cst = arith.constant dense<0.000000e+00> : vector<16x256xf32>
    %5 = tpu.matmul %3, %4, %cst {dimension_numbers = #tpu.dot_dimension_numbers<[1], [0], [0], [1], [0, 0, 1, 1], [], []>} : vector<16x32xbf16>, vector<32x256xbf16>, vector<16x256xf32> -> vector<16x256xf32>
    %c0_4 = arith.constant 0 : index
    %c0_5 = arith.constant 0 : index
    %6 = vector.load %arg4[%c0_4, %c0_5] : memref<1x256xf32, #tpu.memory_space<vmem>>, vector<1x256xf32>
    %7 = vector.broadcast %6 : vector<1x256xf32> to vector<16x256xf32>
    %8 = arith.addf %5, %7 : vector<16x256xf32>
    %cst_6 = arith.constant 0.000000e+00 : f32
    %9 = vector.broadcast %cst_6 : f32 to vector<16x256xf32>
    %10 = arith.maximumf %8, %9 : vector<16x256xf32>
    %c0_7 = arith.constant 0 : index
    %c0_8 = arith.constant 0 : index
    %11 = vector.load %arg8[%c0_7, %c0_8] : memref<16x32xf32, #tpu.memory_space<vmem>>, vector<16x32xf32>
    %12 = arith.truncf %10 : vector<16x256xf32> to vector<16x256xbf16>
    %c0_9 = arith.constant 0 : index
    %c0_10 = arith.constant 0 : index
    %13 = vector.load %arg5[%c0_9, %c0_10] : memref<256x32xbf16, #tpu.memory_space<vmem>>, vector<256x32xbf16>
    %cst_11 = arith.constant dense<0.000000e+00> : vector<16x32xf32>
    %14 = tpu.matmul %12, %13, %cst_11 {dimension_numbers = #tpu.dot_dimension_numbers<[1], [0], [0], [1], [0, 0, 1, 1], [], []>} : vector<16x256xbf16>, vector<256x32xbf16>, vector<16x32xf32> -> vector<16x32xf32>
    %15 = arith.addf %11, %14 : vector<16x32xf32>
    %c0_12 = arith.constant 0 : index
    %c0_13 = arith.constant 0 : index
    %16 = vector.load %arg8[%c0_12, %c0_13] : memref<16x32xf32, #tpu.memory_space<vmem>>, vector<16x32xf32>
    tpu.vector_store %arg8[%c0_12, %c0_13], %15 {strides = array<i32>} : memref<16x32xf32, #tpu.memory_space<vmem>>, vector<16x32xf32>,
    %c0_i32_14 = arith.constant 0 : i32
    %17 = arith.cmpi eq, %arg1, %c0_i32_14 : i32
    %18 = arith.extui %17 : i1 to i32
    %c0_i32_15 = arith.constant 0 : i32
    %19 = arith.cmpi ne, %18, %c0_i32_15 : i32
    scf.if %19 {
      %c0_16 = arith.constant 0 : index
      %c0_17 = arith.constant 0 : index
      %20 = vector.load %arg8[%c0_16, %c0_17] : memref<16x32xf32, #tpu.memory_space<vmem>>, vector<16x32xf32>
      %c0_18 = arith.constant 0 : index
      %c0_19 = arith.constant 0 : index
      %21 = vector.load %arg6[%c0_18, %c0_19] : memref<1x32xf32, #tpu.memory_space<vmem>>, vector<1x32xf32>
      %22 = vector.broadcast %21 : vector<1x32xf32> to vector<16x32xf32>
      %23 = arith.addf %20, %22 : vector<16x32xf32>
      %c0_20 = arith.constant 0 : index
      %c0_21 = arith.constant 0 : index
      %24 = vector.load %arg7[%c0_20, %c0_21] : memref<16x32xf32, #tpu.memory_space<vmem>>, vector<16x32xf32>
      tpu.vector_store %arg7[%c0_20, %c0_21], %23 {strides = array<i32>} : memref<16x32xf32, #tpu.memory_space<vmem>>, vector<16x32xf32>,
    } else {
    }
    return
  }
  func.func @transform_0(%arg0: i32, %arg1: i32) -> (i32, i32) {
    %c0_i32 = arith.constant 0 : i32
    %c0_i32_0 = arith.constant 0 : i32
    return %arg0, %c0_i32 : i32, i32
  }
  func.func @transform_1(%arg0: i32, %arg1: i32) -> (i32, i32) {
    %c0_i32 = arith.constant 0 : i32
    %c0_i32_0 = arith.constant 0 : i32
    return %c0_i32, %arg1 : i32, i32
  }
  func.func @transform_2(%arg0: i32, %arg1: i32) -> (i32, i32) {
    %c0_i32 = arith.constant 0 : i32
    %c0_i32_0 = arith.constant 0 : i32
    return %c0_i32, %arg1 : i32, i32
  }
  func.func @transform_3(%arg0: i32, %arg1: i32) -> (i32, i32) {
    %c0_i32 = arith.constant 0 : i32
    %c0_i32_0 = arith.constant 0 : i32
    return %arg1, %c0_i32 : i32, i32
  }
  func.func @transform_4(%arg0: i32, %arg1: i32) -> (i32, i32) {
    %c0_i32 = arith.constant 0 : i32
    %c0_i32_0 = arith.constant 0 : i32
    %c0_i32_1 = arith.constant 0 : i32
    return %c0_i32, %c0_i32_0 : i32, i32
  }
  func.func @transform_5(%arg0: i32, %arg1: i32) -> (i32, i32) {
    %c0_i32 = arith.constant 0 : i32
    %c0_i32_0 = arith.constant 0 : i32
    return %arg0, %c0_i32 : i32, i32
  }
}

</mosaic_0001>

<llo_original>
// kernel: tpu_custom_call.1
$region0: #{tpu_custom_call.1}
  #allocation0 [shape = 'u32[]', space=smem, size = 0x4, offset = 0x4, fixed_abs, tag = 'smem constant byte address 0x4 - core index']
  #allocation1 [shape = 'u32[144,128]{1,0:T(1,128)}', space=vmem, size = 0x12000, scoped, tag = 'internal scratch']
  #allocation2 [shape = 'f32[16,32]{1,0:T(8,128)}', space=vmem, size = 0x2000, scoped, tag = 'scratch operand']
  %s0 = inlined_call_operand.vmem [shape: bf16[16,32], index: 0, kind: input, shape index: {}]
  %s1 = inlined_call_operand.vmem [shape: bf16[32,256], index: 1, kind: input, shape index: {}]
  %s2 = inlined_call_operand.vmem [shape: f32[1,256], index: 2, kind: input, shape index: {}]
  %s3 = inlined_call_operand.vmem [shape: bf16[256,32], index: 3, kind: input, shape index: {}]
  %s4 = inlined_call_operand.vmem [shape: f32[1,32], index: 4, kind: input, shape index: {}]
  %s5 = inlined_call_operand.hbm [shape: f32[16,32], index: 5, kind: output, shape index: {}]
  %s6 = sld [smem:[#allocation0]]
  $region38: #{tpu_custom_call.1} parent=0
    _
  %s8 = ssub.s32 1, %s6
  %s9 = scalar_select 0, %s8, %s6
  $region1: #{tpu_custom_call.1} parent=0
    #allocation3 [shape = 'u8[8192]{0}', space=vmem, size = 0x2000, scoped, tag = 'output window, operand 0, single buffered']
    #allocation4 [shape = 's32[1]{0}', space=sflag, size = 0x4, scoped, tag = 'scoped memory for tpu_custom_call.1']
    %10 = vsyncpa [#allocation4], 0
    // Predicated region
    $region2: #{tpu_custom_call.1} parent=1 // pred_check
      _
    $region3: #{tpu_custom_call.1} parent=1 // pred_check_branch
      %12 = sbr.rel (0) target = $region5
    $region4: #{tpu_custom_call.1} parent=1 // pred_region
      _
    $region5: #{tpu_custom_call.1} parent=1 // pred_fallthru
      _
    // Predicated region
    $region6: #{tpu_custom_call.1} parent=1 // pred_check
      _
    $region7: #{tpu_custom_call.1} parent=1 // pred_check_branch
      %14 = sbr.rel (0) target = $region9
    $region8: #{tpu_custom_call.1} parent=1 // pred_region
      _
    $region9: #{tpu_custom_call.1} parent=1 // pred_fallthru
      _
    // Predicated region
    $region10: #{tpu_custom_call.1} parent=1 // pred_check
      _
    $region11: #{tpu_custom_call.1} parent=1 // pred_check_branch
      %16 = sbr.rel (0) target = $region13
    $region12: #{tpu_custom_call.1} parent=1 // pred_region
      _
    $region13: #{tpu_custom_call.1} parent=1 // pred_fallthru
      _
    // Predicated region
    $region14: #{tpu_custom_call.1} parent=1 // pred_check
      _
    $region15: #{tpu_custom_call.1} parent=1 // pred_check_branch
      %18 = sbr.rel (0) target = $region17
    $region16: #{tpu_custom_call.1} parent=1 // pred_region
      _
    $region17: #{tpu_custom_call.1} parent=1 // pred_fallthru
      _
    // Predicated region
    $region18: #{tpu_custom_call.1} parent=1 // pred_check
      _
    $region19: #{tpu_custom_call.1} parent=1 // pred_check_branch
      %20 = sbr.rel (0) target = $region21
    $region20: #{tpu_custom_call.1} parent=1 // pred_region
      _
    $region21: #{tpu_custom_call.1} parent=1 // pred_fallthru
      _
    %p22 = scmp.eq.s32.totalorder 0, 0
    // Predicated region
    $region22: #{tpu_custom_call.1} parent=1 // pred_check
      %p23 = pneg %p22
    $region23: #{tpu_custom_call.1} parent=1 // pred_check_branch
      %25 = sbr.rel (%p23) target = $region25
    $region24: #{tpu_custom_call.1} parent=1 // pred_region
      %vm26 = vcmask 261120
      %27 = vst.msk [vmem:[#allocation2] sm:$0xff] %vm26, 0.0
      %28 = vst.msk [vmem:[#allocation2 + $0x8] sm:$0xff] %vm26, 0.0
    $region25: #{tpu_custom_call.1} parent=1 // pred_fallthru
      _
    %v29 = vld [vmem:[%s0] sm:$0xf]
    %v30 = vld [vmem:[%s0 + $0x4] sm:$0xf]
    %v31 = vld [vmem:[%s1] sm:$0xff]
    %v32 = vld [vmem:[%s1 + $0x8] sm:$0xff]
    %v33 = vld [vmem:[%s1 + $0x10] sm:$0xff]
    %v34 = vld [vmem:[%s1 + $0x18] sm:$0xff]
    %v35 = vld [vmem:[%s2] sm:$0x3]
    %v37 = vlaneseq
    %v38 = vshrl.u32 %v37, 7
    %v39 = vsub.s32 0, %v38
    %v40 = vrot.slane %v35, %v39
    %v41 = vlaneseq
    %v42 = vshrl.u32 %v41, 7
    %v43 = vsub.s32 1, %v42
    %v44 = vrot.slane %v35, %v43
    %v49 = vunpack.c.l.b16 %v29
    %v50 = vunpack.c.l.b16 %v30
    %v51 = vpack.c.b16 %v50, %v49
    %v56 = vunpack.c.l.b16 %v31
    %v57 = vunpack.c.h.b16 %v31
    %v58 = vunpack.c.l.b16 %v32
    %v59 = vunpack.c.h.b16 %v32
    %v60 = vunpack.c.l.b16 %v33
    %v61 = vunpack.c.h.b16 %v33
    %v62 = vunpack.c.l.b16 %v34
    %v63 = vunpack.c.h.b16 %v34
    %v64 = vpack.c.b16 %v58, %v56
    %v65 = vpack.c.b16 %v59, %v57
    %v66 = vpack.c.b16 %v62, %v60
    %v67 = vpack.c.b16 %v63, %v61
    %vm72 = vcmask 261120
    %v74 = vsel %vm72, %v51, 0
    %76 = vmatprep.subr.bf16.mxu0 %v65
    %77 = vmatpush1.bf16.msra.mxu0 %v64
    %78 = vmatprep.subr.bf16.mxu0 %v67
    %79 = vmatpush1.bf16.msra.mxu0 %v66
    %80 = vmatprep.subr.bf16.mxu0 0
    %81 = vmatpush1.bf16.msra.mxu0 0
    %82 = vmatprep.subr.bf16.mxu0 0
    %83 = vmatpush1.bf16.msra.mxu0 0
    %84 = vmatprep.subr.bf16.mxu0 0
    %85 = vmatpush1.bf16.msra.mxu0 0
    %86 = vmatprep.subr.bf16.mxu0 0
    %87 = vmatpush1.bf16.msra.mxu0 0
    %88 = vmatprep.subr.bf16.mxu0 0
    %89 = vmatpush1.bf16.msra.mxu0 0
    %90 = vmatprep.subr.bf16.mxu0 0
    %91 = vmatpush1.bf16.msra.mxu0 0
    %92 = vmatprep.subr.bf16.mxu0 0
    %93 = vmatpush1.bf16.msra.mxu0 0
    %94 = vmatprep.subr.bf16.mxu0 0
    %95 = vmatpush1.bf16.msra.mxu0 0
    %96 = vmatprep.subr.bf16.mxu0 0
    %97 = vmatpush1.bf16.msra.mxu0 0
    %98 = vmatprep.subr.bf16.mxu0 0
    %99 = vmatpush1.bf16.msra.mxu0 0
    %100 = vmatprep.subr.bf16.mxu0 0
    %101 = vmatpush1.bf16.msra.mxu0 0
    %102 = vmatprep.subr.bf16.mxu0 0
    %103 = vmatpush1.bf16.msra.mxu0 0
    %104 = vmatprep.subr.bf16.mxu0 0
    %105 = vmatpush1.bf16.msra.mxu0 0
    %106 = vmatprep.subr.bf16.mxu0 0
    %107 = vmatpush1.bf16.msra.mxu0 0
    %108 = vmatprep.mubr.bf16.mxu0 0
    %109 = vmatmul.mubr.bf16.gmra.mrb[0].mxu0 %v74
    %v110 = vpop.f32.mrb[0].mxu0
    %v111 = vadd.f32 %v40, %v110
    %v112 = vpop.f32.mrb[0].mxu0
    %v113 = vadd.f32 %v44, %v112
    %v114 = vpop.f32.mrb[0].mxu0
    %v115 = vadd.f32 %v40, %v114
    %v116 = vpop.f32.mrb[0].mxu0
    %v117 = vadd.f32 %v44, %v116
    %118 = vdwg.mxu0
    %v119 = vmax.f32 %v111, 0.0
    %v120 = vmax.f32 %v113, 0.0
    %v121 = vmax.f32 %v115, 0.0
    %v122 = vmax.f32 %v117, 0.0
    %v123 = vld [vmem:[#allocation2] sm:$0xff]
    %v124 = vld [vmem:[#allocation2 + $0x8] sm:$0xff]
    %v125 = vpack.c.bf16 %v121, %v119
    %v126 = vpack.c.bf16 %v122, %v120
    %v127 = vld [vmem:[%s3] sm:$0xf]
    %v128 = vld [vmem:[%s3 + $0x4] sm:$0xf]
    %v129 = vld [vmem:[%s3 + $0x8] sm:$0xf]
    %v130 = vld [vmem:[%s3 + $0xc] sm:$0xf]
    %v131 = vld [vmem:[%s3 + $0x10] sm:$0xf]
    %v132 = vld [vmem:[%s3 + $0x14] sm:$0xf]
    %v133 = vld [vmem:[%s3 + $0x18] sm:$0xf]
    %v134 = vld [vmem:[%s3 + $0x1c] sm:$0xf]
    %v135 = vld [vmem:[%s3 + $0x20] sm:$0xf]
    %v136 = vld [vmem:[%s3 + $0x24] sm:$0xf]
    %v137 = vld [vmem:[%s3 + $0x28] sm:$0xf]
    %v138 = vld [vmem:[%s3 + $0x2c] sm:$0xf]
    %v139 = vld [vmem:[%s3 + $0x30] sm:$0xf]
    %v140 = vld [vmem:[%s3 + $0x34] sm:$0xf]
    %v141 = vld [vmem:[%s3 + $0x38] sm:$0xf]
    %v142 = vld [vmem:[%s3 + $0x3c] sm:$0xf]
    %v143 = vld [vmem:[%s3 + $0x40] sm:$0xf]
    %v144 = vld [vmem:[%s3 + $0x44] sm:$0xf]
    %v145 = vld [vmem:[%s3 + $0x48] sm:$0xf]
    %v146 = vld [vmem:[%s3 + $0x4c] sm:$0xf]
    %v147 = vld [vmem:[%s3 + $0x50] sm:$0xf]
    %v148 = vld [vmem:[%s3 + $0x54] sm:$0xf]
    %v149 = vld [vmem:[%s3 + $0x58] sm:$0xf]
    %v150 = vld [vmem:[%s3 + $0x5c] sm:$0xf]
    %v151 = vld [vmem:[%s3 + $0x60] sm:$0xf]
    %v152 = vld [vmem:[%s3 + $0x64] sm:$0xf]
    %v153 = vld [vmem:[%s3 + $0x68] sm:$0xf]
    %v154 = vld [vmem:[%s3 + $0x6c] sm:$0xf]
    %v155 = vld [vmem:[%s3 + $0x70] sm:$0xf]
    %v156 = vld [vmem:[%s3 + $0x74] sm:$0xf]
    %v157 = vld [vmem:[%s3 + $0x78] sm:$0xf]
    %v158 = vld [vmem:[%s3 + $0x7c] sm:$0xf]
    %v191 = vunpack.c.l.b16 %v127
    %v192 = vunpack.c.l.b16 %v128
    %v193 = vunpack.c.l.b16 %v129
    %v194 = vunpack.c.l.b16 %v130
    %v195 = vunpack.c.l.b16 %v131
    %v196 = vunpack.c.l.b16 %v132
    %v197 = vunpack.c.l.b16 %v133
    %v198 = vunpack.c.l.b16 %v134
    %v199 = vunpack.c.l.b16 %v135
    %v200 = vunpack.c.l.b16 %v136
    %v201 = vunpack.c.l.b16 %v137
    %v202 = vunpack.c.l.b16 %v138
    %v203 = vunpack.c.l.b16 %v139
    %v204 = vunpack.c.l.b16 %v140
    %v205 = vunpack.c.l.b16 %v141
    %v206 = vunpack.c.l.b16 %v142
    %v207 = vunpack.c.l.b16 %v143
    %v208 = vunpack.c.l.b16 %v144
    %v209 = vunpack.c.l.b16 %v145
    %v210 = vunpack.c.l.b16 %v146
    %v211 = vunpack.c.l.b16 %v147
    %v212 = vunpack.c.l.b16 %v148
    %v213 = vunpack.c.l.b16 %v149
    %v214 = vunpack.c.l.b16 %v150
    %v215 = vunpack.c.l.b16 %v151
    %v216 = vunpack.c.l.b16 %v152
    %v217 = vunpack.c.l.b16 %v153
    %v218 = vunpack.c.l.b16 %v154
    %v219 = vunpack.c.l.b16 %v155
    %v220 = vunpack.c.l.b16 %v156
    %v221 = vunpack.c.l.b16 %v157
    %v222 = vunpack.c.l.b16 %v158
    %v223 = vpack.c.b16 %v192, %v191
    %v224 = vpack.c.b16 %v194, %v193
    %v225 = vpack.c.b16 %v196, %v195
    %v226 = vpack.c.b16 %v198, %v197
    %v227 = vpack.c.b16 %v200, %v199
    %v228 = vpack.c.b16 %v202, %v201
    %v229 = vpack.c.b16 %v204, %v203
    %v230 = vpack.c.b16 %v206, %v205
    %v231 = vpack.c.b16 %v208, %v207
    %v232 = vpack.c.b16 %v210, %v209
    %v233 = vpack.c.b16 %v212, %v211
    %v234 = vpack.c.b16 %v214, %v213
    %v235 = vpack.c.b16 %v216, %v215
    %v236 = vpack.c.b16 %v218, %v217
    %v237 = vpack.c.b16 %v220, %v219
    %v238 = vpack.c.b16 %v222, %v221
    %255 = vmatprep.subr.bf16.mxu0 0
    %256 = vmatpush1.bf16.msra.mxu0 %v223
    %257 = vmatprep.subr.bf16.mxu0 0
    %258 = vmatpush1.bf16.msra.mxu0 %v224
    %259 = vmatprep.subr.bf16.mxu0 0
    %260 = vmatpush1.bf16.msra.mxu0 %v225
    %261 = vmatprep.subr.bf16.mxu0 0
    %262 = vmatpush1.bf16.msra.mxu0 %v226
    %263 = vmatprep.subr.bf16.mxu0 0
    %264 = vmatpush1.bf16.msra.mxu0 %v227
    %265 = vmatprep.subr.bf16.mxu0 0
    %266 = vmatpush1.bf16.msra.mxu0 %v228
    %267 = vmatprep.subr.bf16.mxu0 0
    %268 = vmatpush1.bf16.msra.mxu0 %v229
    %269 = vmatprep.subr.bf16.mxu0 0
    %270 = vmatpush1.bf16.msra.mxu0 %v230
    %271 = vmatprep.subr.bf16.mxu0 0
    %272 = vmatpush1.bf16.msra.mxu0 %v231
    %273 = vmatprep.subr.bf16.mxu0 0
    %274 = vmatpush1.bf16.msra.mxu0 %v232
    %275 = vmatprep.subr.bf16.mxu0 0
    %276 = vmatpush1.bf16.msra.mxu0 %v233
    %277 = vmatprep.subr.bf16.mxu0 0
    %278 = vmatpush1.bf16.msra.mxu0 %v234
    %279 = vmatprep.subr.bf16.mxu0 0
    %280 = vmatpush1.bf16.msra.mxu0 %v235
    %281 = vmatprep.subr.bf16.mxu0 0
    %282 = vmatpush1.bf16.msra.mxu0 %v236
    %283 = vmatprep.subr.bf16.mxu0 0
    %284 = vmatpush1.bf16.msra.mxu0 %v237
    %285 = vmatprep.subr.bf16.mxu0 0
    %286 = vmatpush1.bf16.msra.mxu0 %v238
    %287 = vmatprep.mubr.bf16.mxu0 %v126
    %288 = vmatmul.mubr.bf16.gmra.mrb[0].mxu0 %v125
    %v289 = vpop.f32.mrb[0].mxu0
    %v290 = vadd.f32 0.0, %v289
    %v291 = vpop.f32.mrb[0].mxu0
    %v292 = vpop.f32.mrb[0].mxu0
    %v293 = vadd.f32 0.0, %v292
    %v294 = vpop.f32.mrb[0].mxu0
    %295 = vdwg.mxu0
    %v296 = vadd.f32 %v123, %v290
    %v297 = vadd.f32 %v124, %v293
    %298 = vst.msk [vmem:[#allocation2] sm:$0xff] %vm72, %v296
    %299 = vst.msk [vmem:[#allocation2 + $0x8] sm:$0xff] %vm72, %v297
    // Predicated region
    $region26: #{tpu_custom_call.1} parent=1 // pred_check
      %p300 = pneg %p22
    $region27: #{tpu_custom_call.1} parent=1 // pred_check_branch
      %302 = sbr.rel (%p300) target = $region29
    $region28: #{tpu_custom_call.1} parent=1 // pred_region
      %v303 = vld [vmem:[#allocation2] sm:$0xff]
      %v304 = vld [vmem:[#allocation2 + $0x8] sm:$0xff]
      %v305 = vld [vmem:[%s4] sm:$0x1]
      %v307 = vlaneseq
      %v308 = vshrl.u32 %v307, 7
      %v309 = vsub.s32 0, %v308
      %v310 = vrot.slane %v305, %v309
      %v312 = vadd.f32 %v303, %v310
      %v313 = vadd.f32 %v304, %v310
      %314 = vst.msk [vmem:[#allocation3] sm:$0xff] %vm72, %v312
      %315 = vst.msk [vmem:[#allocation3 + $0x8] sm:$0xff] %vm72, %v313
    $region29: #{tpu_custom_call.1} parent=1 // pred_fallthru
      _
    // Predicated region
    $region30: #{tpu_custom_call.1} parent=1 // pred_check
      _
    $region31: #{tpu_custom_call.1} parent=1 // pred_check_branch
      %317 = sbr.rel (0) target = $region33
    $region32: #{tpu_custom_call.1} parent=1 // pred_region
      %s319 = ssub.s32 256, 256
      %320 = vsyncadd [#allocation4], %s319
      %s321 = sshll.u32 [#allocation3], 4
      %s322 = int_to_ptr.vmem [resolvable:$true] %s321
      %327 = dma.vmem_to_hbm [thread:$0]  %s322, 256, %s5, [#allocation4], 128, 128, 8
    $region33: #{tpu_custom_call.1} parent=1 // pred_fallthru
      _
    // Predicated region
    $region34: #{tpu_custom_call.1} parent=1 // pred_check
      _
    $region35: #{tpu_custom_call.1} parent=1 // pred_check_branch
      %329 = sbr.rel (0) target = $region37
    $region36: #{tpu_custom_call.1} parent=1 // pred_region
      %330 = dma.done [#allocation4], 256
    $region37: #{tpu_custom_call.1} parent=1 // pred_fallthru
      _
    %331 = vsyncpa [#allocation4], 1

</llo_original>
